<compile_context>
chip_gen: v6e
topology: v6e:2x2x1
jax: 0.10.0
libtpu: 0.0.40
codegen_flags: <defaults>
</compile_context>

<pallas_src>
import functools

import jax
import jax.numpy as jnp
from jax import lax
from jax.experimental import pallas as pl
from jax.experimental.pallas import tpu as pltpu


_EPS = 1e-7


def _round_up(x, m):
    return (x + m - 1) // m * m


def _vmem_budget():
    """(per-f32-tile byte budget, scoped VMEM limit), picked per generation.

    In + out double-buffered plus ~3 f32 compute temporaries is ~7x the tile
    budget in flight, which stays well under the limit on every generation.
    """
    cap = None
    try:
        cap = pltpu.get_tpu_info().vmem_capacity_bytes
    except Exception:
        cap = None
    if cap is not None and cap >= 100 * 1024 * 1024:     # v5e / v6e: 128 MiB
        return 6 * 1024 * 1024, 64 * 1024 * 1024
    # v7x (64 MiB physical, 32 MiB scoped default) or unknown: conservative.
    return 3 * 1024 * 1024, 48 * 1024 * 1024


_TILE_BYTES, _VMEM_LIMIT = _vmem_budget()


# ---------------------------------------------------------------------------
# Small helpers
# ---------------------------------------------------------------------------
def _pow_p(x, power):
    """x**power, specializing small integer powers to VALU multiplies."""
    if power == 1.0:
        return x
    if power == 2.0:
        return x * x
    if power == 3.0:
        return x * x * x
    if power == 4.0:
        x2 = x * x
        return x2 * x2
    return jnp.power(x, power)


def _root_p(s, power):
    """s**(1/power) with a sqrt fast path for the default p=2."""
    if power == 1.0:
        return s
    if power == 2.0:
        return jnp.sqrt(s)
    return jnp.power(s, 1.0 / power)


# ---------------------------------------------------------------------------
# Kernels
# ---------------------------------------------------------------------------
def _channel_kernel(x_ref, o_ref, *, power, eps):
    """4-D path.  Block is (C, T_hw): reduce over channels (sublane axis)."""
    x = x_ref[...].astype(jnp.float32)                        # (C, T_hw)
    ssum = jnp.sum(_pow_p(x, power), axis=0, keepdims=True)   # (1, T_hw)
    inv = pl.reciprocal(_root_p(ssum, power) + eps, approx=False)
    o_ref[...] = (x * inv).astype(o_ref.dtype)


def _rows_kernel(x_ref, o_ref, *, groups, chans, power, eps):
    """2-D path.  Block is (TM, W = groups*chans); each row holds `groups`
    independent C-vectors packed along lanes (groups == 1 for wide C).

    Segment sums are broadcast back to full lane width with one block-diagonal
    ones matmul so the store is a single dense (TM, W) write (no vst.msk)."""
    x = x_ref[...].astype(jnp.float32)                        # (TM, W)
    xp = _pow_p(x, power)
    if groups == 1:
        ssum = jnp.sum(xp, axis=-1, keepdims=True)            # (TM, 1)
    else:
        w = groups * chans
        row = lax.broadcasted_iota(jnp.int32, (w, w), 0) // chans
        col = lax.broadcasted_iota(jnp.int32, (w, w), 1) // chans
        seg = (row == col).astype(jnp.float32)                # block-diag ones
        ssum = jnp.dot(xp, seg,
                       precision=lax.Precision.HIGHEST,
                       preferred_element_type=jnp.float32)    # (TM, W)
    inv = pl.reciprocal(_root_p(ssum, power) + eps, approx=False)
    o_ref[...] = (x * inv).astype(o_ref.dtype)


# ---------------------------------------------------------------------------
# pallas_call wrappers
# ---------------------------------------------------------------------------
def _nchw_call(x3, power, eps):
    """x3: (B, C, HW); normalize over the C axis.  Ragged cdiv grid over HW."""
    B, C, HW = x3.shape
    c_pad = _round_up(C, 8)                                   # sublane padding
    cap = max(128, (_TILE_BYTES // (c_pad * 4)) // 128 * 128)
    if HW <= 128:
        t_hw = HW                                             # full-dim block
        grid_hw = 1
    else:
        t_hw = min(HW // 128 * 128, cap)
        grid_hw = pl.cdiv(HW, t_hw)
        if B * grid_hw < 2 and t_hw > 128:                    # feed both v7x TCs
            t_hw = _round_up(t_hw // 2, 128)
            grid_hw = pl.cdiv(HW, t_hw)

    kernel = functools.partial(_channel_kernel, power=power, eps=eps)
    return pl.pallas_call(
        kernel,
        out_shape=jax.ShapeDtypeStruct((B, C, HW), x3.dtype),
        grid_spec=pltpu.PrefetchScalarGridSpec(
            num_scalar_prefetch=0,
            grid=(B, grid_hw),
            in_specs=[pl.BlockSpec((None, C, t_hw), lambda b, t: (b, 0, t))],
            out_specs=pl.BlockSpec((None, C, t_hw), lambda b, t: (b, 0, t)),
        ),
        compiler_params=pltpu.CompilerParams(
            dimension_semantics=("parallel", "parallel"),
            vmem_limit_bytes=_VMEM_LIMIT),
    )(x3)


def _rows_call(x2, groups, chans, power, eps):
    """x2: (R, groups*chans); each row holds `groups` C-vectors to normalize
    independently.  Ragged cdiv grid over rows."""
    R, W = x2.shape
    w_pad = _round_up(W, 128)
    cap = max(8, (_TILE_BYTES // (w_pad * 4)) // 8 * 8)
    if R <= 8:
        tile_r = R                                            # full-dim block
        grid_r = 1
    else:
        tile_r = min(R // 8 * 8, cap)
        grid_r = pl.cdiv(R, tile_r)
        if grid_r < 2 and tile_r >= 16:                       # feed both v7x TCs
            tile_r = max(8, _round_up(tile_r // 2, 8))
            grid_r = pl.cdiv(R, tile_r)

    # TODO(synk): add a W-tiled two-pass reduction for extremely wide 2-D inputs
    # (8 x W blocks that would strain v7x's 64 MiB VMEM); not needed at these C.
    kernel = functools.partial(_rows_kernel, groups=groups, chans=chans,
                               power=power, eps=eps)
    return pl.pallas_call(
        kernel,
        out_shape=jax.ShapeDtypeStruct((R, W), x2.dtype),
        grid_spec=pltpu.PrefetchScalarGridSpec(
            num_scalar_prefetch=0,
            grid=(grid_r,),
            in_specs=[pl.BlockSpec((tile_r, W), lambda i: (i, 0))],
            out_specs=pl.BlockSpec((tile_r, W), lambda i: (i, 0)),
        ),
        compiler_params=pltpu.CompilerParams(
            dimension_semantics=("parallel",),
            vmem_limit_bytes=_VMEM_LIMIT),
    )(x2)


def normalize(x: jax.Array, *, power: float = 2, eps: float = _EPS) -> jax.Array:
    """PyTorch-equivalent Normalize(power).forward(x): Lp-normalize over dim 1."""
    p = float(power)
    if x.ndim == 2:
        M, C = x.shape
        if C <= 128 and 128 % C == 0:
            # Fold rows into lanes so every block is a dense 128-lane tile
            # (avoids masked partial stores for narrow C).  Ragged M is padded
            # with a handful of zero rows (they normalize to 0 and are dropped).
            k = 128 // C
            pad_rows = (-M) % k
            x2 = jnp.pad(x, ((0, pad_rows), (0, 0))) if pad_rows else x
            Mp = M + pad_rows
            out = _rows_call(x2.reshape(Mp // k, k * C), k, C, p, eps)
            out = out.reshape(Mp, C)
            return out[:M] if pad_rows else out
        return _rows_call(x, 1, C, p, eps)
    elif x.ndim >= 3:
        B, C = x.shape[0], x.shape[1]
        rest = 1
        for d in x.shape[2:]:
            rest *= d
        # Free reshape (stays contiguous) -> no transposes, ~2 HBM passes total.
        out = _nchw_call(x.reshape(B, C, rest), p, eps)
        return out.reshape(x.shape)
    else:
        raise ValueError(f"unsupported rank {x.ndim}")


# ---------------------------------------------------------------------------
# Reference + self-test
# ---------------------------------------------------------------------------
def _reference(x, power=2.0, eps=_EPS):
    if power == 2.0:
        norm = jnp.sqrt(jnp.sum(x * x, axis=1, keepdims=True))
    else:
        norm = jnp.power(jnp.sum(jnp.power(x, power), axis=1, keepdims=True),
                         1.0 / power)
    return x / (norm + eps)


if __name__ == "__main__":
    key = jax.random.PRNGKey(0)
    k1, k2, k3, k4, k5 = jax.random.split(key, 5)

    # 4-D NCHW feature map (B=2, C=4, H=W=16): normalized over channels,
    # processed directly in NCHW layout.
    x4 = jax.random.normal(k1, (2, 4, 16, 16), dtype=jnp.float32)
    out4 = jax.block_until_ready(normalize(x4))
    assert out4.shape == x4.shape and out4.dtype == x4.dtype
    assert jnp.allclose(out4, _reference(x4), atol=1e-5, rtol=1e-5)

    # 2-D (patches=128, C=32): rows->lanes folded, block-diag-matmul dense-store path.
    x2 = jax.random.normal(k2, (128, 32), dtype=jnp.float32)
    out2 = jax.block_until_ready(normalize(x2))
    assert out2.shape == x2.shape and out2.dtype == x2.dtype
    assert jnp.allclose(out2, _reference(x2), atol=1e-5, rtol=1e-5)

    # 2-D (patches=64, C=256): plain wide-row path (single dense store per tile).
    x2w = jax.random.normal(k3, (64, 256), dtype=jnp.float32)
    out2w = jax.block_until_ready(normalize(x2w))
    assert jnp.allclose(out2w, _reference(x2w), atol=1e-5, rtol=1e-5)

    # Ragged 4-D case (B=1, HW=324 not a multiple of 128): exercises the cdiv
    # grid with a partial last block and the B==1 / two-step-grid logic.
    x4r = jax.random.normal(k4, (1, 4, 18, 18), dtype=jnp.float32)
    out4r = jax.block_until_ready(normalize(x4r))
    assert jnp.allclose(out4r, _reference(x4r), atol=1e-5, rtol=1e-5)

    # Ragged 2-D narrow-C case (M=130 not a multiple of 128//C): exercises the
    # small row pad + folded path + partial last row block.
    x2r = jax.random.normal(k5, (130, 32), dtype=jnp.float32)
    out2r = jax.block_until_ready(normalize(x2r))
    assert out2r.shape == x2r.shape
    assert jnp.allclose(out2r, _reference(x2r), atol=1e-5, rtol=1e-5)

    print("KERNEL_OK")
</pallas_src>

<mosaic_0001>
module attributes {stable_mosaic.version = 11 : i64} {
  func.func @_channel_kernel(%arg0: i32, %arg1: i32, %arg2: memref<1x4x256xf32, #tpu.memory_space<vmem>>, %arg3: memref<1x4x256xf32, #tpu.memory_space<vmem>>) attributes {dimension_semantics = [#tpu.dimension_semantics<parallel>, #tpu.dimension_semantics<parallel>], iteration_bounds = array<i64: 2, 1>, scalar_prefetch = 0 : i64, scratch_operands = 0 : i64, tpu.core_type = #tpu.core_type<tc>, window_params = [{transform_indices = @transform_0, window_bounds = array<i64: 1, 4, 256>}, {transform_indices = @transform_1, window_bounds = array<i64: 1, 4, 256>}]} {
    %c0 = arith.constant 0 : index
    %c0_0 = arith.constant 0 : index
    %c0_1 = arith.constant 0 : index
    %0 = vector.load %arg2[%c0, %c0_0, %c0_1] : memref<1x4x256xf32, #tpu.memory_space<vmem>>, vector<1x4x256xf32>
    %1 = vector.shape_cast %0 : vector<1x4x256xf32> to vector<4x256xf32>
    %2 = arith.mulf %1, %1 : vector<4x256xf32>
    %cst = arith.constant dense<0.000000e+00> : vector<256xf32>
    %3 = vector.multi_reduction <add>, %2, %cst [0] : vector<4x256xf32> to vector<256xf32>
    %4 = vector.shape_cast %3 : vector<256xf32> to vector<1x256xf32>
    %5 = math.sqrt %4 : vector<1x256xf32>
    %cst_2 = arith.constant 1.000000e-07 : f32
    %6 = vector.broadcast %cst_2 : f32 to vector<1x256xf32>
    %7 = arith.addf %5, %6 : vector<1x256xf32>
    %8 = tpu.reciprocal %7 : vector<1x256xf32> -> vector<1x256xf32>
    %9 = vector.broadcast %8 : vector<1x256xf32> to vector<4x256xf32>
    %10 = arith.mulf %1, %9 : vector<4x256xf32>
    %c0_3 = arith.constant 0 : index
    %c0_4 = arith.constant 0 : index
    %c0_5 = arith.constant 0 : index
    %11 = vector.load %arg3[%c0_3, %c0_4, %c0_5] : memref<1x4x256xf32, #tpu.memory_space<vmem>>, vector<1x4x256xf32>
    %12 = vector.shape_cast %11 : vector<1x4x256xf32> to vector<4x256xf32>
    %13 = vector.shape_cast %10 : vector<4x256xf32> to vector<1x4x256xf32>
    tpu.vector_store %arg3[%c0_3, %c0_4, %c0_5], %13 {strides = array<i32>} : memref<1x4x256xf32, #tpu.memory_space<vmem>>, vector<1x4x256xf32>,
    return
  }
  func.func @transform_0(%arg0: i32, %arg1: i32) -> (i32, i32, i32) {
    %c0_i32 = arith.constant 0 : i32
    %c0_i32_0 = arith.constant 0 : i32
    return %arg0, %c0_i32, %arg1 : i32, i32, i32
  }
  func.func @transform_1(%arg0: i32, %arg1: i32) -> (i32, i32, i32) {
    %c0_i32 = arith.constant 0 : i32
    %c0_i32_0 = arith.constant 0 : i32
    return %arg0, %c0_i32, %arg1 : i32, i32, i32
  }
}

</mosaic_0001>

<llo_original>
// kernel: tpu_custom_call.1
$region0: #{tpu_custom_call.1}
  #allocation0 [shape = 'u32[]', space=smem, size = 0x4, offset = 0x4, fixed_abs, tag = 'smem constant byte address 0x4 - core index']
  #allocation1 [shape = 'u32[144,128]{1,0:T(1,128)}', space=vmem, size = 0x12000, scoped, tag = 'internal scratch']
  %s0 = inlined_call_operand.hbm [shape: f32[2,4,256], index: 0, kind: input, shape index: {}]
  %s1 = inlined_call_operand.hbm [shape: f32[2,4,256], index: 1, kind: output, shape index: {}]
  %s2 = sld [smem:[#allocation0]]
  $region41: #{tpu_custom_call.1} parent=0
    _
  %s4 = ssub.s32 1, %s2
  %s5 = scalar_select 0, %s4, %s2
  $region1: #{tpu_custom_call.1} parent=0
    #allocation2 [shape = 'u8[8192]{0}', space=vmem, size = 0x2000, scoped, tag = 'input window, operand 0']
    #allocation3 [shape = 's32[2]{0}', space=sflag, size = 0x8, scoped, tag = 'scoped memory for tpu_custom_call.1']
    #allocation4 [shape = 's32[2]{0}', space=sflag, size = 0x8, scoped, tag = 'scoped memory for tpu_custom_call.1']
    #allocation5 [shape = 'u8[8192]{0}', space=vmem, size = 0x2000, scoped, tag = 'output window, operand 0']
    %6 = vsyncpa [#allocation3], 0
    %s7 = scalar_lea.sflag [#allocation3], 1
    %8 = vsyncpa %s7, 0
    %9 = vsyncpa [#allocation4], 0
    %s10 = scalar_lea.sflag [#allocation4], 1
    %11 = vsyncpa %s10, 0
    loop: start=0, step=1, limit=4
    $region2: #{tpu_custom_call.1} parent=1 // loop_pre_header
      _
    $region3: #{tpu_custom_call.1} parent=1 // loop_header
      %s13 = sphi 0, %s17
      %p14 = scmp.ge.s32.totalorder %s13, 4
      %s20 = sphi 0, %s32
      %s21 = sphi 0, %s28
      %s22 = sphi 0, %s20
      %s23 = sphi 0, %s21
      %s24 = sphi 0, %s22
      %s25 = sphi 0, %s23
      %s37 = sphi 0, %s39
      %s40 = sphi 0, %s37
      %s41 = sphi 0, %s40
      %s57 = sphi 0, %s41
      %s65 = sphi 0, %s67
      %s68 = sphi 0, %s65
      %s69 = sphi 0, %s68
      %s85 = sphi 0, %s69
    $region4: #{tpu_custom_call.1} parent=1 // loop_header_branch
      %16 = sbr.rel (%p14) target = $region8
    $region5: #{tpu_custom_call.1} parent=1 // loop_body
      %s18 = ssub.s32 %s13, 1
      %s19 = ssub.s32 %s13, 2
      %s26 = sadd.s32 1, %s21
      %p27 = scmp.ge.s32.totalorder %s26, 1
      %s28 = scalar_select %p27, 0, %s26
      %s29 = sadd.s32 1, %s20
      %s30 = scalar_select %p27, %s29, %s20
      %p31 = scmp.ge.s32.totalorder %s30, 2
      %s32 = scalar_select %p31, 0, %s30
      %s33 = ssub.s32 %s20, %s32
      %s34 = ssub.s32 %s21, %s28
      %s35 = sor.u32 %s33, %s34
      %p36 = scmp.eq.s32.totalorder %s35, 0
      %s38 = sadd.s32 %s37, 1
      %s39 = scalar_select %p36, %s37, %s38
      %p42 = pneg %p36
      %p43 = scmp.eq.s32.totalorder %s13, 1
      %p44 = por %p42, %p43
      %p45 = scmp.ne.s32.totalorder %s37, %s40
      %p46 = scmp.eq.s32.totalorder %s13, 0
      %p47 = por %p45, %p46
      %p48 = scmp.ne.s32.totalorder %s37, %s40
      %p49 = scmp.eq.s32.totalorder %s18, 1
      %p50 = por %p48, %p49
      %p51 = scmp.ne.s32.totalorder %s40, %s41
      %p52 = scmp.eq.s32.totalorder %s18, 0
      %p53 = por %p51, %p52
      %p54 = scmp.ne.s32.totalorder %s40, %s41
      %p55 = scmp.eq.s32.totalorder %s19, 1
      %p56 = por %p54, %p55
      %p58 = scmp.ne.s32.totalorder %s41, %s57
      %p59 = scmp.eq.s32.totalorder %s19, 0
      %p60 = por %p58, %p59
      %s61 = ssub.s32 %s20, %s32
      %s62 = ssub.s32 %s21, %s28
      %s63 = sor.u32 %s61, %s62
      %p64 = scmp.eq.s32.totalorder %s63, 0
      %s66 = sadd.s32 %s65, 1
      %s67 = scalar_select %p64, %s65, %s66
      %p70 = pneg %p64
      %p71 = scmp.eq.s32.totalorder %s13, 1
      %p72 = por %p70, %p71
      %p73 = scmp.ne.s32.totalorder %s65, %s68
      %p74 = scmp.eq.s32.totalorder %s13, 0
      %p75 = por %p73, %p74
      %p76 = scmp.ne.s32.totalorder %s65, %s68
      %p77 = scmp.eq.s32.totalorder %s18, 1
      %p78 = por %p76, %p77
      %p79 = scmp.ne.s32.totalorder %s68, %s69
      %p80 = scmp.eq.s32.totalorder %s18, 0
      %p81 = por %p79, %p80
      %p82 = scmp.ne.s32.totalorder %s68, %s69
      %p83 = scmp.eq.s32.totalorder %s19, 1
      %p84 = por %p82, %p83
      %p86 = scmp.ne.s32.totalorder %s69, %s85
      %p87 = scmp.eq.s32.totalorder %s19, 0
      %p88 = por %p86, %p87
      %p89 = scmp.le.s32.totalorder 1, %s13
      %p90 = scmp.lt.s32.totalorder %s13, 3
      %p91 = pnand %p89, %p90
      %p92 = pneg %p91
      // Predicated region
      $region9: #{tpu_custom_call.1} parent=5 // pred_check
        _
      $region10: #{tpu_custom_call.1} parent=5 // pred_check_branch
        %94 = sbr.rel (%p91) target = $region12
      $region11: #{tpu_custom_call.1} parent=5 // pred_region
        %s95 = ssub.s32 %s13, 1
      $region12: #{tpu_custom_call.1} parent=5 // pred_fallthru
        _
      %p96 = scmp.lt.s32.totalorder %s13, 2
      // Predicated region
      $region13: #{tpu_custom_call.1} parent=5 // pred_check
        %p97 = pneg %p96
      $region14: #{tpu_custom_call.1} parent=5 // pred_check_branch
        %99 = sbr.rel (%p97) target = $region16
      $region15: #{tpu_custom_call.1} parent=5 // pred_region
        // Predicated region
        $region17: #{tpu_custom_call.1} parent=15 // pred_check
          %p100 = pneg %p47
        $region18: #{tpu_custom_call.1} parent=15 // pred_check_branch
          %102 = sbr.rel (%p100) target = $region20
        $region19: #{tpu_custom_call.1} parent=15 // pred_region
          %s103 = sand.u32 %s37, 1
          %s104 = scalar_lea.sflag [#allocation3], %s103
          %s105 = sand.u32 %s37, 1
          %s106 = smul.addr %s105, 8
          %s107 = scalar_lea.vmem [#allocation2], %s106
          %s108 = smul.u32 2, %s21
          %s110 = ssub.s32 128, 128
          %111 = vsyncadd %s104, %s110
          %s112 = smul.addr %s20, 2
          %s113 = sadd.s32 %s108, %s112
          %s114 = smul.addr %s113, 64
          %s115 = scalar_lea.hbm %s0, %s114
          %s117 = sshll.u32 %s107, 4
          %s118 = int_to_ptr.vmem [resolvable:$true] %s117
          %120 = dma.hbm_to_vmem [thread:$0]  %s115, 128, %s118, %s104
        $region20: #{tpu_custom_call.1} parent=15 // pred_fallthru
          _
      $region16: #{tpu_custom_call.1} parent=5 // pred_fallthru
        _
      %p121 = scmp.le.s32.totalorder 1, %s13
      %p122 = scmp.lt.s32.totalorder %s13, 3
      %p123 = pnand %p121, %p122
      %p124 = pneg %p123
      // Predicated region
      $region21: #{tpu_custom_call.1} parent=5 // pred_check
        _
      $region22: #{tpu_custom_call.1} parent=5 // pred_check_branch
        %126 = sbr.rel (%p123) target = $region24
      $region23: #{tpu_custom_call.1} parent=5 // pred_region
        %s127 = ssub.s32 %s13, 1
        %s128 = sand.u32 %s40, 1
        %s129 = scalar_lea.sflag [#allocation3], %s128
        %s130 = sand.u32 %s40, 1
        %s131 = smul.addr %s130, 8
        %s132 = scalar_lea.vmem [#allocation2], %s131
        // Predicated region
        $region25: #{tpu_custom_call.1} parent=23 // pred_check
          %p133 = pneg %p53
        $region26: #{tpu_custom_call.1} parent=23 // pred_check_branch
          %135 = sbr.rel (%p133) target = $region28
        $region27: #{tpu_custom_call.1} parent=23 // pred_region
          %136 = dma.done %s129, 128
        $region28: #{tpu_custom_call.1} parent=23 // pred_fallthru
          _
        %s137 = sand.u32 %s40, 1
        %s138 = scalar_lea.sflag [#allocation3], %s137
        %s139 = sand.u32 %s40, 1
        %s140 = smul.addr %s139, 8
        %s141 = scalar_lea.vmem [#allocation2], %s140
        %p142 = pneg %p53
        %p143 = pneg %p50
        %p144 = pneg %p81
        %p145 = pneg %p78
        %s146 = sand.u32 %s68, 1
        %s147 = scalar_lea.sflag [#allocation4], %s146
        %s148 = sand.u32 %s68, 1
        %s149 = smul.addr %s148, 8
        %s150 = scalar_lea.vmem [#allocation5], %s149
        %s151 = smul.u32 2, %s23
        %s152 = smul.u32 2, %s23
        %v153 = vld [vmem:[%s132] sm:$0xff]
        %v154 = vmul.f32 %v153, %v153
        %v156 = vcombine.high %v154, %v154
        %vm158 = vcmask 1043456
        %v159 = vsel %vm158, %v154, 0.0
        %v160 = vrot.slane %v159, 4
        %v161 = vadd.f32 %v159, %v160
        %v162 = vrot.slane %v161, 2
        %v163 = vadd.f32 %v161, %v162
        %v164 = vrot.slane %v163, 1
        %v165 = vadd.f32 %v163, %v164
        %v166 = vsel %vm158, %v156, 0.0
        %v167 = vrot.slane %v166, 4
        %v168 = vadd.f32 %v166, %v167
        %v169 = vrot.slane %v168, 2
        %v170 = vadd.f32 %v168, %v169
        %v171 = vrot.slane %v170, 1
        %v172 = vadd.f32 %v170, %v171
        %v173 = vrsqrt.pop %v165
        %v174 = vmul.f32 %v165, %v173
        %vm175 = vcmp.eq.f32.partialorder %v165, inf
        %v176 = vsel %vm175, %v165, %v174
        %vm177 = vcmp.eq.f32.partialorder %v165, 0.0
        %v178 = vand.u32 %v165, 2147483648
        %v179 = vsel %vm177, %v178, %v176
        %v180 = vrsqrt.pop %v172
        %v181 = vmul.f32 %v172, %v180
        %vm182 = vcmp.eq.f32.partialorder %v172, inf
        %v183 = vsel %vm182, %v172, %v181
        %vm184 = vcmp.eq.f32.partialorder %v172, 0.0
        %v185 = vand.u32 %v172, 2147483648
        %v186 = vsel %vm184, %v185, %v183
        %v187 = vadd.f32 %v179, 1e-07
        %v188 = vadd.f32 %v186, 1e-07
        %v189 = vrcp.pop %v187
        %v190 = vrcp.pop %v188
        %v193 = vcombine.low %v189, %v190
        %v195 = vmul.f32 %v153, %v193
        %196 = vst [vmem:[%s150] sm:$0xff] %v195
        %s197 = sand.u32 %s68, 1
        %s198 = scalar_lea.sflag [#allocation4], %s197
        %s199 = sand.u32 %s68, 1
        %s200 = smul.addr %s199, 8
        %s201 = scalar_lea.vmem [#allocation5], %s200
        // Predicated region
        $region29: #{tpu_custom_call.1} parent=23 // pred_check
          %p202 = pneg %p78
        $region30: #{tpu_custom_call.1} parent=23 // pred_check_branch
          %204 = sbr.rel (%p202) target = $region32
        $region31: #{tpu_custom_call.1} parent=23 // pred_region
          %s205 = smul.u32 2, %s23
          %s207 = ssub.s32 128, 128
          %208 = vsyncadd %s198, %s207
          %s209 = smul.addr %s22, 2
          %s210 = sadd.s32 %s205, %s209
          %s211 = smul.addr %s210, 64
          %s212 = scalar_lea.hbm %s1, %s211
          %s214 = sshll.u32 %s201, 4
          %s215 = int_to_ptr.vmem [resolvable:$true] %s214
          %217 = dma.vmem_to_hbm [thread:$0]  %s215, 128, %s212, %s198
        $region32: #{tpu_custom_call.1} parent=23 // pred_fallthru
          _
      $region24: #{tpu_custom_call.1} parent=5 // pred_fallthru
        _
      %p218 = scmp.le.s32.totalorder 2, %s13
      // Predicated region
      $region33: #{tpu_custom_call.1} parent=5 // pred_check
        %p219 = pneg %p218
      $region34: #{tpu_custom_call.1} parent=5 // pred_check_branch
        %221 = sbr.rel (%p219) target = $region36
      $region35: #{tpu_custom_call.1} parent=5 // pred_region
        %s222 = ssub.s32 %s13, 2
        // Predicated region
        $region37: #{tpu_custom_call.1} parent=35 // pred_check
          %p223 = pneg %p84
        $region38: #{tpu_custom_call.1} parent=35 // pred_check_branch
          %225 = sbr.rel (%p223) target = $region40
        $region39: #{tpu_custom_call.1} parent=35 // pred_region
          %s226 = sand.u32 %s69, 1
          %s227 = scalar_lea.sflag [#allocation4], %s226
          %s228 = sand.u32 %s69, 1
          %s229 = smul.addr %s228, 8
          %s230 = scalar_lea.vmem [#allocation5], %s229
          %231 = dma.done %s227, 128
        $region40: #{tpu_custom_call.1} parent=35 // pred_fallthru
          _
      $region36: #{tpu_custom_call.1} parent=5 // pred_fallthru
        _
    $region6: #{tpu_custom_call.1} parent=1 // loop_footer
      %s17 = sadd.s32 1, %s13
    $region7: #{tpu_custom_call.1} parent=1 // loop_footer_branch
      %12 = sbr.rel target = $region3
    $region8: #{tpu_custom_call.1} parent=1 // loop_exit
      _
    %232 = vsyncpa [#allocation3], 1
    %s233 = scalar_lea.sflag [#allocation3], 1
    %234 = vsyncpa %s233, 1
    %235 = vsyncpa [#allocation4], 1
    %s236 = scalar_lea.sflag [#allocation4], 1
    %237 = vsyncpa %s236, 1

</llo_original>
